<compile_context>
chip_gen: v5e
topology: v5e:2x2
jax: 0.10.0
libtpu: 0.0.40
codegen_flags: <defaults>
</compile_context>

<pallas_src>
import functools

import jax
import jax.numpy as jnp
from jax.experimental import pallas as pl
from jax.experimental.pallas import tpu as pltpu

KL_WEIGHT = 1.0  # stand-in for settings.kl_weight


def _round_up(n, m):
    return (n + m - 1) // m * m


def vae_kernel(x_ref, wfe_ref, bfe_ref, wmv_ref, bmv_ref, eps_ref,
               z_ref, mu_ref, kl_ref, kl_acc,
               *, d_out_p, tile_b, b_true):
    i = pl.program_id(0)

    @pl.when(i == 0)
    def _init():
        kl_acc[0] = jnp.float32(0.0)

    # feature_extractor(x): Linear + ReLU (bf16 MXU inputs, f32 accumulation)
    x_bf = x_ref[...].astype(jnp.bfloat16)
    feat = jnp.dot(x_bf, wfe_ref[...], preferred_element_type=jnp.float32)
    feat = jnp.maximum(feat + bfe_ref[...], 0.0)

    # fused fc_mu / fc_logvar: one (TILE_B, D) x (D, 2D) matmul
    mulv = jnp.dot(feat.astype(jnp.bfloat16), wmv_ref[...],
                   preferred_element_type=jnp.float32) + bmv_ref[...]
    mu = mulv[:, :d_out_p]          # static, 128-aligned slice
    logvar = mulv[:, d_out_p:]

    # reparameterize: z = mu + eps * exp(0.5 * logvar)
    std = jnp.exp(0.5 * logvar)     # single EUP transcendental; exp(logvar) == std*std
    z = mu + eps_ref[...] * std

    z_ref[...] = z.astype(z_ref.dtype)
    mu_ref[...] = mu.astype(mu_ref.dtype)

    # KL: mean_b( -0.5 * sum_d(1 + logvar - mu^2 - exp(logvar)) )
    # padded feature columns contribute exactly 0; padded batch rows are masked.
    kl_terms = 1.0 + logvar - mu * mu - std * std          # (tile_b, d_out_p)
    row = jax.lax.broadcasted_iota(jnp.int32, (tile_b, 1), 0) + i * tile_b
    scale = jnp.where(row < b_true, -0.5 / b_true, 0.0)    # fold -0.5 and 1/B, mask pad rows
    kl_acc[0] += jnp.sum(kl_terms * scale)

    @pl.when(i == pl.num_programs(0) - 1)
    def _finalize():
        kl_ref[0] = kl_acc[0]


def vae_forward(x, params, eps, *, tile_b=128, kl_weight=KL_WEIGHT):
    B, d_in = x.shape
    d_out = params["w_mu"].shape[1]

    # pad to lane/sublane friendly shapes
    d_in_p = _round_up(d_in, 128)
    d_out_p = _round_up(d_out, 128)
    tile_b = max(8, min(tile_b, _round_up(B, 8)))
    b_p = _round_up(B, tile_b)
    num_tiles = b_p // tile_b

    x_p = jnp.pad(x, ((0, b_p - B), (0, d_in_p - d_in)))
    eps_p = jnp.pad(eps, ((0, b_p - B), (0, d_out_p - d_out)))

    w_fe = jnp.pad(params["w_fe"], ((0, d_in_p - d_in), (0, d_out_p - d_out)))
    b_fe = jnp.pad(params["b_fe"], ((0, 0), (0, d_out_p - d_out)))
    w_mu = jnp.pad(params["w_mu"], ((0, d_out_p - d_out), (0, d_out_p - d_out)))
    w_lv = jnp.pad(params["w_lv"], ((0, d_out_p - d_out), (0, d_out_p - d_out)))
    b_mu = jnp.pad(params["b_mu"], ((0, 0), (0, d_out_p - d_out)))
    b_lv = jnp.pad(params["b_lv"], ((0, 0), (0, d_out_p - d_out)))
    w_mulv = jnp.concatenate([w_mu, w_lv], axis=1)   # (d_out_p, 2*d_out_p), bf16
    b_mulv = jnp.concatenate([b_mu, b_lv], axis=1)   # (1, 2*d_out_p), f32

    kernel = functools.partial(vae_kernel, d_out_p=d_out_p, tile_b=tile_b, b_true=B)

    z_p, mu_p, kl = pl.pallas_call(
        kernel,
        out_shape=(
            jax.ShapeDtypeStruct((b_p, d_out_p), jnp.float32),   # z
            jax.ShapeDtypeStruct((b_p, d_out_p), jnp.float32),   # mu
            jax.ShapeDtypeStruct((1,), jnp.float32),             # kl (SMEM scalar)
        ),
        grid=(num_tiles,),
        in_specs=[
            pl.BlockSpec((tile_b, d_in_p), lambda i: (i, 0)),        # x tile
            pl.BlockSpec((d_in_p, d_out_p), lambda i: (0, 0)),       # w_fe (resident)
            pl.BlockSpec((1, d_out_p), lambda i: (0, 0)),            # b_fe (resident)
            pl.BlockSpec((d_out_p, 2 * d_out_p), lambda i: (0, 0)),  # w_mulv (resident)
            pl.BlockSpec((1, 2 * d_out_p), lambda i: (0, 0)),        # b_mulv (resident)
            pl.BlockSpec((tile_b, d_out_p), lambda i: (i, 0)),       # eps tile
        ],
        out_specs=(
            pl.BlockSpec((tile_b, d_out_p), lambda i: (i, 0)),
            pl.BlockSpec((tile_b, d_out_p), lambda i: (i, 0)),
            pl.BlockSpec(memory_space=pltpu.MemorySpace.SMEM),
        ),
        scratch_shapes=[pltpu.SMEM((1,), jnp.float32)],
        compiler_params=pltpu.CompilerParams(
            # batch axis carries the KL accumulator -> reduction axis -> "arbitrary"
            dimension_semantics=("arbitrary",),
            vmem_limit_bytes=32 * 1024 * 1024,
        ),
    )(x_p, w_fe, b_fe, w_mulv, b_mulv, eps_p)

    z = z_p[:B, :d_out]
    mu = mu_p[:B, :d_out]
    divergence = kl[0]
    return z, mu, kl_weight * divergence


def init_params(key, d_in, d_out):
    ks = jax.random.split(key, 6)
    s_fe = 1.0 / jnp.sqrt(d_in)
    s_fc = 1.0 / jnp.sqrt(d_out)
    u = lambda k, shp, s: jax.random.uniform(k, shp, jnp.float32, -s, s)
    return {
        # weights stored bf16 (MXU-native); biases f32
        "w_fe": u(ks[0], (d_in, d_out), s_fe).astype(jnp.bfloat16),
        "b_fe": u(ks[1], (1, d_out), s_fe),
        "w_mu": u(ks[2], (d_out, d_out), s_fc).astype(jnp.bfloat16),
        "b_mu": u(ks[3], (1, d_out), s_fc),
        "w_lv": u(ks[4], (d_out, d_out), s_fc).astype(jnp.bfloat16),
        "b_lv": u(ks[5], (1, d_out), s_fc),
    }


if __name__ == "__main__":
    # 128-aligned demo shapes (lane-dense tiles, two batch-grid steps)
    B, D_IN, D_OUT = 256, 128, 128

    key = jax.random.PRNGKey(0)
    k_x, k_p, k_eps = jax.random.split(key, 3)

    x = jax.random.normal(k_x, (B, D_IN), jnp.float32)
    params = init_params(k_p, D_IN, D_OUT)
    eps = jax.random.normal(k_eps, (B, D_OUT), jnp.float32)  # torch.randn_like(std)

    z, mu, kl = vae_forward(x, params, eps)
    jax.block_until_ready((z, mu, kl))

    # pure-JAX reference using the same bf16-weight / f32-accumulate arithmetic
    xb = x.astype(jnp.bfloat16)
    feat = jnp.maximum(
        jnp.dot(xb, params["w_fe"], preferred_element_type=jnp.float32) + params["b_fe"], 0.0)
    fb = feat.astype(jnp.bfloat16)
    mu_r = jnp.dot(fb, params["w_mu"], preferred_element_type=jnp.float32) + params["b_mu"]
    lv_r = jnp.dot(fb, params["w_lv"], preferred_element_type=jnp.float32) + params["b_lv"]
    z_r = mu_r + eps * jnp.exp(0.5 * lv_r)
    kl_r = KL_WEIGHT * jnp.mean(
        -0.5 * jnp.sum(1.0 + lv_r - mu_r ** 2 - jnp.exp(lv_r), axis=1))

    assert jnp.allclose(mu, mu_r, atol=2e-3, rtol=2e-3)
    assert jnp.allclose(z, z_r, atol=2e-3, rtol=2e-3)
    assert jnp.allclose(kl, kl_r, atol=2e-3, rtol=2e-3)

    print("KERNEL_OK")
</pallas_src>

<mosaic_0001>
module attributes {stable_mosaic.version = 11 : i64} {
  func.func @vae_kernel(%arg0: i32, %arg1: memref<128x128xf32, #tpu.memory_space<vmem>>, %arg2: memref<128x128xbf16, #tpu.memory_space<vmem>>, %arg3: memref<1x128xf32, #tpu.memory_space<vmem>>, %arg4: memref<128x256xbf16, #tpu.memory_space<vmem>>, %arg5: memref<1x256xf32, #tpu.memory_space<vmem>>, %arg6: memref<128x128xf32, #tpu.memory_space<vmem>>, %arg7: memref<128x128xf32, #tpu.memory_space<vmem>>, %arg8: memref<128x128xf32, #tpu.memory_space<vmem>>, %arg9: memref<1xf32, #tpu.memory_space<smem>>, %arg10: memref<1xf32, #tpu.memory_space<smem>>) attributes {dimension_semantics = [#tpu.dimension_semantics<arbitrary>], iteration_bounds = array<i64: 2>, scalar_prefetch = 0 : i64, scratch_operands = 1 : i64, tpu.core_type = #tpu.core_type<tc>, window_params = [{transform_indices = @transform_0, window_bounds = array<i64: 128, 128>}, {pipeline_mode = #tpu.pipeline_mode<synchronous>, transform_indices = @transform_1, window_bounds = array<i64: 128, 128>}, {pipeline_mode = #tpu.pipeline_mode<synchronous>, transform_indices = @transform_2, window_bounds = array<i64: 1, 128>}, {pipeline_mode = #tpu.pipeline_mode<synchronous>, transform_indices = @transform_3, window_bounds = array<i64: 128, 256>}, {pipeline_mode = #tpu.pipeline_mode<synchronous>, transform_indices = @transform_4, window_bounds = array<i64: 1, 256>}, {transform_indices = @transform_5, window_bounds = array<i64: 128, 128>}, {transform_indices = @transform_6, window_bounds = array<i64: 128, 128>}, {transform_indices = @transform_7, window_bounds = array<i64: 128, 128>}, {transform_indices = @transform_8, window_bounds = array<i64: 1>}]} {
    %c0_i32 = arith.constant 0 : i32
    %0 = arith.cmpi eq, %arg0, %c0_i32 : i32
    %1 = arith.extui %0 : i1 to i32
    %c0_i32_0 = arith.constant 0 : i32
    %2 = arith.cmpi ne, %1, %c0_i32_0 : i32
    scf.if %2 {
      %cst_26 = arith.constant 0.000000e+00 : f32
      %c0_27 = arith.constant 0 : index
      %55 = memref.load %arg10[%c0_27] : memref<1xf32, #tpu.memory_space<smem>>
      memref.store %cst_26, %arg10[%c0_27] : memref<1xf32, #tpu.memory_space<smem>>
    } else {
    }
    %c0 = arith.constant 0 : index
    %c0_1 = arith.constant 0 : index
    %3 = vector.load %arg1[%c0, %c0_1] : memref<128x128xf32, #tpu.memory_space<vmem>>, vector<128x128xf32>
    %4 = arith.truncf %3 : vector<128x128xf32> to vector<128x128xbf16>
    %c0_2 = arith.constant 0 : index
    %c0_3 = arith.constant 0 : index
    %5 = vector.load %arg2[%c0_2, %c0_3] : memref<128x128xbf16, #tpu.memory_space<vmem>>, vector<128x128xbf16>
    %cst = arith.constant dense<0.000000e+00> : vector<128x128xf32>
    %6 = tpu.matmul %4, %5, %cst {dimension_numbers = #tpu.dot_dimension_numbers<[1], [0], [0], [1], [0, 0, 1, 1], [], []>} : vector<128x128xbf16>, vector<128x128xbf16>, vector<128x128xf32> -> vector<128x128xf32>
    %c0_4 = arith.constant 0 : index
    %c0_5 = arith.constant 0 : index
    %7 = vector.load %arg3[%c0_4, %c0_5] : memref<1x128xf32, #tpu.memory_space<vmem>>, vector<1x128xf32>
    %8 = vector.broadcast %7 : vector<1x128xf32> to vector<128x128xf32>
    %9 = arith.addf %6, %8 : vector<128x128xf32>
    %cst_6 = arith.constant 0.000000e+00 : f32
    %10 = vector.broadcast %cst_6 : f32 to vector<128x128xf32>
    %11 = arith.maximumf %9, %10 : vector<128x128xf32>
    %12 = arith.truncf %11 : vector<128x128xf32> to vector<128x128xbf16>
    %c0_7 = arith.constant 0 : index
    %c0_8 = arith.constant 0 : index
    %13 = vector.load %arg4[%c0_7, %c0_8] : memref<128x256xbf16, #tpu.memory_space<vmem>>, vector<128x256xbf16>
    %cst_9 = arith.constant dense<0.000000e+00> : vector<128x256xf32>
    %14 = tpu.matmul %12, %13, %cst_9 {dimension_numbers = #tpu.dot_dimension_numbers<[1], [0], [0], [1], [0, 0, 1, 1], [], []>} : vector<128x128xbf16>, vector<128x256xbf16>, vector<128x256xf32> -> vector<128x256xf32>
    %c0_10 = arith.constant 0 : index
    %c0_11 = arith.constant 0 : index
    %15 = vector.load %arg5[%c0_10, %c0_11] : memref<1x256xf32, #tpu.memory_space<vmem>>, vector<1x256xf32>
    %16 = vector.broadcast %15 : vector<1x256xf32> to vector<128x256xf32>
    %17 = arith.addf %14, %16 : vector<128x256xf32>
    %18 = vector.extract_strided_slice %17 {offsets = [0, 0], sizes = [128, 128], strides = [1, 1]} : vector<128x256xf32> to vector<128x128xf32>
    %19 = vector.extract_strided_slice %17 {offsets = [0, 128], sizes = [128, 128], strides = [1, 1]} : vector<128x256xf32> to vector<128x128xf32>
    %cst_12 = arith.constant 5.000000e-01 : f32
    %20 = vector.broadcast %cst_12 : f32 to vector<128x128xf32>
    %21 = arith.mulf %20, %19 : vector<128x128xf32>
    %22 = math.exp %21 : vector<128x128xf32>
    %c0_13 = arith.constant 0 : index
    %c0_14 = arith.constant 0 : index
    %23 = vector.load %arg6[%c0_13, %c0_14] : memref<128x128xf32, #tpu.memory_space<vmem>>, vector<128x128xf32>
    %24 = arith.mulf %23, %22 : vector<128x128xf32>
    %25 = arith.addf %18, %24 : vector<128x128xf32>
    %c0_15 = arith.constant 0 : index
    %c0_16 = arith.constant 0 : index
    %26 = vector.load %arg7[%c0_15, %c0_16] : memref<128x128xf32, #tpu.memory_space<vmem>>, vector<128x128xf32>
    tpu.vector_store %arg7[%c0_15, %c0_16], %25 {strides = array<i32>} : memref<128x128xf32, #tpu.memory_space<vmem>>, vector<128x128xf32>,
    %c0_17 = arith.constant 0 : index
    %c0_18 = arith.constant 0 : index
    %27 = vector.load %arg8[%c0_17, %c0_18] : memref<128x128xf32, #tpu.memory_space<vmem>>, vector<128x128xf32>
    tpu.vector_store %arg8[%c0_17, %c0_18], %18 {strides = array<i32>} : memref<128x128xf32, #tpu.memory_space<vmem>>, vector<128x128xf32>,
    %cst_19 = arith.constant 1.000000e+00 : f32
    %28 = vector.broadcast %cst_19 : f32 to vector<128x128xf32>
    %29 = arith.addf %28, %19 : vector<128x128xf32>
    %30 = arith.mulf %18, %18 : vector<128x128xf32>
    %31 = arith.subf %29, %30 : vector<128x128xf32>
    %32 = arith.mulf %22, %22 : vector<128x128xf32>
    %33 = arith.subf %31, %32 : vector<128x128xf32>
    %34 = tpu.iota {dimensions = array<i32: 0>} : vector<128x1xi32>
    %c128_i32 = arith.constant 128 : i32
    %35 = arith.muli %arg0, %c128_i32 : i32
    %36 = vector.broadcast %35 : i32 to vector<128x1xi32>
    %37 = arith.addi %34, %36 : vector<128x1xi32>
    %c256_i32 = arith.constant 256 : i32
    %38 = vector.broadcast %c256_i32 : i32 to vector<128x1xi32>
    %39 = arith.cmpi slt, %37, %38 : vector<128x1xi32>
    %cst_20 = arith.constant -0.001953125 : f32
    %cst_21 = arith.constant 0.000000e+00 : f32
    %40 = vector.broadcast %cst_20 : f32 to vector<128x1xf32>
    %41 = vector.broadcast %cst_21 : f32 to vector<128x1xf32>
    %42 = arith.select %39, %40, %41 : vector<128x1xi1>, vector<128x1xf32>
    %c0_22 = arith.constant 0 : index
    %43 = memref.load %arg10[%c0_22] : memref<1xf32, #tpu.memory_space<smem>>
    %44 = vector.broadcast %42 : vector<128x1xf32> to vector<128x128xf32>
    %45 = arith.mulf %33, %44 : vector<128x128xf32>
    %46 = vector.shape_cast %45 : vector<128x128xf32> to vector<1x128x128xf32>
    %cst_23 = arith.constant dense<0.000000e+00> : vector<1xf32>
    %47 = vector.multi_reduction <add>, %46, %cst_23 [1, 2] : vector<1x128x128xf32> to vector<1xf32>
    %48 = vector.shape_cast %47 : vector<1xf32> to vector<1x1x1xf32>
    %49 = vector.extract %48[0, 0, 0] : f32 from vector<1x1x1xf32>
    %50 = arith.addf %43, %49 : f32
    %c0_24 = arith.constant 0 : index
    %51 = memref.load %arg10[%c0_24] : memref<1xf32, #tpu.memory_space<smem>>
    memref.store %50, %arg10[%c0_24] : memref<1xf32, #tpu.memory_space<smem>>
    %c1_i32 = arith.constant 1 : i32
    %52 = arith.cmpi eq, %arg0, %c1_i32 : i32
    %53 = arith.extui %52 : i1 to i32
    %c0_i32_25 = arith.constant 0 : i32
    %54 = arith.cmpi ne, %53, %c0_i32_25 : i32
    scf.if %54 {
      %c0_26 = arith.constant 0 : index
      %55 = memref.load %arg10[%c0_26] : memref<1xf32, #tpu.memory_space<smem>>
      %c0_27 = arith.constant 0 : index
      %56 = memref.load %arg9[%c0_27] : memref<1xf32, #tpu.memory_space<smem>>
      memref.store %55, %arg9[%c0_27] : memref<1xf32, #tpu.memory_space<smem>>
    } else {
    }
    return
  }
  func.func @transform_0(%arg0: i32) -> (i32, i32) {
    %c0_i32 = arith.constant 0 : i32
    %c0_i32_0 = arith.constant 0 : i32
    return %arg0, %c0_i32 : i32, i32
  }
  func.func @transform_1(%arg0: i32) -> (i32, i32) {
    %c0_i32 = arith.constant 0 : i32
    %c0_i32_0 = arith.constant 0 : i32
    %c0_i32_1 = arith.constant 0 : i32
    return %c0_i32, %c0_i32_0 : i32, i32
  }
  func.func @transform_2(%arg0: i32) -> (i32, i32) {
    %c0_i32 = arith.constant 0 : i32
    %c0_i32_0 = arith.constant 0 : i32
    %c0_i32_1 = arith.constant 0 : i32
    return %c0_i32, %c0_i32_0 : i32, i32
  }
  func.func @transform_3(%arg0: i32) -> (i32, i32) {
    %c0_i32 = arith.constant 0 : i32
    %c0_i32_0 = arith.constant 0 : i32
    %c0_i32_1 = arith.constant 0 : i32
    return %c0_i32, %c0_i32_0 : i32, i32
  }
  func.func @transform_4(%arg0: i32) -> (i32, i32) {
    %c0_i32 = arith.constant 0 : i32
    %c0_i32_0 = arith.constant 0 : i32
    %c0_i32_1 = arith.constant 0 : i32
    return %c0_i32, %c0_i32_0 : i32, i32
  }
  func.func @transform_5(%arg0: i32) -> (i32, i32) {
    %c0_i32 = arith.constant 0 : i32
    %c0_i32_0 = arith.constant 0 : i32
    return %arg0, %c0_i32 : i32, i32
  }
  func.func @transform_6(%arg0: i32) -> (i32, i32) {
    %c0_i32 = arith.constant 0 : i32
    %c0_i32_0 = arith.constant 0 : i32
    return %arg0, %c0_i32 : i32, i32
  }
  func.func @transform_7(%arg0: i32) -> (i32, i32) {
    %c0_i32 = arith.constant 0 : i32
    %c0_i32_0 = arith.constant 0 : i32
    return %arg0, %c0_i32 : i32, i32
  }
  func.func @transform_8(%arg0: i32) -> i32 {
    %c0_i32 = arith.constant 0 : i32
    %c0_i32_0 = arith.constant 0 : i32
    return %c0_i32 : i32
  }
}

</mosaic_0001>

<llo_original>
// kernel: tpu_custom_call.1
$region0: #{tpu_custom_call.1}
  #allocation0 [shape = 'u32[]', space=smem, size = 0x4, offset = 0x4, fixed_abs, tag = 'smem constant byte address 0x4 - core index']
  #allocation1 [shape = 'u32[72,128]{1,0:T(1,128)}', space=vmem, size = 0x9000, scoped, tag = 'internal scratch']
  #allocation2 [shape = 'f32[1]{0:T(128)}', space=smem, size = 0x200, scoped, tag = 'scratch operand']
  %s0 = inlined_call_operand.hbm [shape: f32[256,128], index: 0, kind: input, shape index: {}]
  %s1 = inlined_call_operand.hbm [shape: bf16[128,128], index: 1, kind: input, shape index: {}]
  %s2 = inlined_call_operand.vmem [shape: f32[1,128], index: 2, kind: input, shape index: {}]
  %s3 = inlined_call_operand.hbm [shape: bf16[128,256], index: 3, kind: input, shape index: {}]
  %s4 = inlined_call_operand.vmem [shape: f32[1,256], index: 4, kind: input, shape index: {}]
  %s5 = inlined_call_operand.hbm [shape: f32[256,128], index: 5, kind: input, shape index: {}]
  %s6 = inlined_call_operand.hbm [shape: f32[256,128], index: 6, kind: output, shape index: {0}]
  %s7 = inlined_call_operand.hbm [shape: f32[256,128], index: 7, kind: output, shape index: {1}]
  %s8 = inlined_call_operand.hbm [shape: f32[1], index: 8, kind: output, shape index: {2}]
  %9 = xla_tuple %s6, %s7, %s8
  %s10 = sld [smem:[#allocation0]]
  $region97: #{tpu_custom_call.1} parent=0
    _
  %s12 = ssub.s32 1, %s10
  %s13 = scalar_select 0, %s12, %s10
  $region1: #{tpu_custom_call.1} parent=0
    #allocation3 [shape = 'u8[131072]{0}', space=vmem, size = 0x20000, scoped, tag = 'input window, operand 0']
    #allocation4 [shape = 's32[2]{0}', space=sflag, size = 0x8, scoped, tag = 'scoped memory for tpu_custom_call.1']
    #allocation5 [shape = 's32[2]{0}', space=sflag, size = 0x8, scoped, tag = 'scoped memory for tpu_custom_call.1']
    #allocation6 [shape = 's32[2]{0}', space=sflag, size = 0x8, scoped, tag = 'scoped memory for tpu_custom_call.1']
    #allocation7 [shape = 'u8[32768]{0}', space=vmem, size = 0x8000, scoped, tag = 'input window, operand 1, single buffered']
    #allocation8 [shape = 's32[1]{0}', space=sflag, size = 0x4, scoped, tag = 'scoped memory for tpu_custom_call.1']
    #allocation9 [shape = 'u8[65536]{0}', space=vmem, size = 0x10000, scoped, tag = 'input window, operand 3, single buffered']
    #allocation10 [shape = 'u8[131072]{0}', space=vmem, size = 0x20000, scoped, tag = 'input window, operand 5']
    #allocation11 [shape = 's32[2]{0}', space=sflag, size = 0x8, scoped, tag = 'scoped memory for tpu_custom_call.1']
    #allocation12 [shape = 'u8[131072]{0}', space=vmem, size = 0x20000, scoped, tag = 'output window, operand 0']
    #allocation13 [shape = 'u8[131072]{0}', space=vmem, size = 0x20000, scoped, tag = 'output window, operand 1']
    #allocation14 [shape = 's32[2]{0}', space=sflag, size = 0x8, scoped, tag = 'scoped memory for tpu_custom_call.1']
    #allocation15 [shape = 'u8[512]{0}', space=smem, size = 0x200, scoped, tag = 'output window, operand 2, single buffered']
    %14 = vsyncpa [#allocation4], 0
    %s15 = scalar_lea.sflag [#allocation4], 1
    %16 = vsyncpa %s15, 0
    %17 = vsyncpa [#allocation8], 0
    %18 = vsyncpa [#allocation11], 0
    %s19 = scalar_lea.sflag [#allocation11], 1
    %20 = vsyncpa %s19, 0
    %21 = vsyncpa [#allocation5], 0
    %s22 = scalar_lea.sflag [#allocation5], 1
    %23 = vsyncpa %s22, 0
    %24 = vsyncpa [#allocation14], 0
    %s25 = scalar_lea.sflag [#allocation14], 1
    %26 = vsyncpa %s25, 0
    %27 = vsyncpa [#allocation6], 0
    loop: start=0, step=1, limit=4
    $region2: #{tpu_custom_call.1} parent=1 // loop_pre_header
      _
    $region3: #{tpu_custom_call.1} parent=1 // loop_header
      %s29 = sphi 0, %s33
      %p30 = scmp.ge.s32.totalorder %s29, 4
      %s39 = sphi 0, %s41
      %s42 = sphi 0, %s39
      %s43 = sphi 0, %s42
      %s59 = sphi 0, %s43
      %s63 = sphi 0, %s63
      %s65 = sphi 0, %s63
      %s66 = sphi 0, %s65
      %s80 = sphi 0, %s66
      %s84 = sphi 0, %s84
      %s86 = sphi 0, %s84
      %s87 = sphi 0, %s86
      %s101 = sphi 0, %s87
      %s105 = sphi 0, %s105
      %s107 = sphi 0, %s105
      %s108 = sphi 0, %s107
      %s122 = sphi 0, %s108
      %s126 = sphi 0, %s126
      %s128 = sphi 0, %s126
      %s129 = sphi 0, %s128
      %s143 = sphi 0, %s129
      %s149 = sphi 0, %s151
      %s152 = sphi 0, %s149
      %s153 = sphi 0, %s152
      %s169 = sphi 0, %s153
      %s175 = sphi 0, %s177
      %s178 = sphi 0, %s175
      %s179 = sphi 0, %s178
      %s195 = sphi 0, %s179
      %s201 = sphi 0, %s203
      %s204 = sphi 0, %s201
      %s205 = sphi 0, %s204
      %s221 = sphi 0, %s205
      %s225 = sphi 0, %s225
      %s227 = sphi 0, %s225
      %s228 = sphi 0, %s227
      %s242 = sphi 0, %s228
    $region4: #{tpu_custom_call.1} parent=1 // loop_header_branch
      %32 = sbr.rel (%p30) target = $region8
    $region5: #{tpu_custom_call.1} parent=1 // loop_body
      %s34 = ssub.s32 %s29, 1
      %s35 = ssub.s32 %s29, 2
      %s36 = sadd.s32 %s29, 1
      %s37 = ssub.s32 %s29, %s36
      %p38 = scmp.eq.s32.totalorder %s37, 0
      %s40 = sadd.s32 %s39, 1
      %s41 = scalar_select %p38, %s39, %s40
      %p44 = pneg %p38
      %p45 = scmp.eq.s32.totalorder %s29, 1
      %p46 = por %p44, %p45
      %p47 = scmp.ne.s32.totalorder %s39, %s42
      %p48 = scmp.eq.s32.totalorder %s29, 0
      %p49 = por %p47, %p48
      %p50 = scmp.ne.s32.totalorder %s39, %s42
      %p51 = scmp.eq.s32.totalorder %s34, 1
      %p52 = por %p50, %p51
      %p53 = scmp.ne.s32.totalorder %s42, %s43
      %p54 = scmp.eq.s32.totalorder %s34, 0
      %p55 = por %p53, %p54
      %p56 = scmp.ne.s32.totalorder %s42, %s43
      %p57 = scmp.eq.s32.totalorder %s35, 1
      %p58 = por %p56, %p57
      %p60 = scmp.ne.s32.totalorder %s43, %s59
      %p61 = scmp.eq.s32.totalorder %s35, 0
      %p62 = por %p60, %p61
      %s64 = sadd.s32 %s63, 1
      %p67 = scmp.eq.s32.totalorder %s29, 1
      %p68 = scmp.ne.s32.totalorder %s63, %s65
      %p69 = scmp.eq.s32.totalorder %s29, 0
      %p70 = por %p68, %p69
      %p71 = scmp.ne.s32.totalorder %s63, %s65
      %p72 = scmp.eq.s32.totalorder %s34, 1
      %p73 = por %p71, %p72
      %p74 = scmp.ne.s32.totalorder %s65, %s66
      %p75 = scmp.eq.s32.totalorder %s34, 0
      %p76 = por %p74, %p75
      %p77 = scmp.ne.s32.totalorder %s65, %s66
      %p78 = scmp.eq.s32.totalorder %s35, 1
      %p79 = por %p77, %p78
      %p81 = scmp.ne.s32.totalorder %s66, %s80
      %p82 = scmp.eq.s32.totalorder %s35, 0
      %p83 = por %p81, %p82
      %s85 = sadd.s32 %s84, 1
      %p88 = scmp.eq.s32.totalorder %s29, 1
      %p89 = scmp.ne.s32.totalorder %s84, %s86
      %p90 = scmp.eq.s32.totalorder %s29, 0
      %p91 = por %p89, %p90
      %p92 = scmp.ne.s32.totalorder %s84, %s86
      %p93 = scmp.eq.s32.totalorder %s34, 1
      %p94 = por %p92, %p93
      %p95 = scmp.ne.s32.totalorder %s86, %s87
      %p96 = scmp.eq.s32.totalorder %s34, 0
      %p97 = por %p95, %p96
      %p98 = scmp.ne.s32.totalorder %s86, %s87
      %p99 = scmp.eq.s32.totalorder %s35, 1
      %p100 = por %p98, %p99
      %p102 = scmp.ne.s32.totalorder %s87, %s101
      %p103 = scmp.eq.s32.totalorder %s35, 0
      %p104 = por %p102, %p103
      %s106 = sadd.s32 %s105, 1
      %p109 = scmp.eq.s32.totalorder %s29, 1
      %p110 = scmp.ne.s32.totalorder %s105, %s107
      %p111 = scmp.eq.s32.totalorder %s29, 0
      %p112 = por %p110, %p111
      %p113 = scmp.ne.s32.totalorder %s105, %s107
      %p114 = scmp.eq.s32.totalorder %s34, 1
      %p115 = por %p113, %p114
      %p116 = scmp.ne.s32.totalorder %s107, %s108
      %p117 = scmp.eq.s32.totalorder %s34, 0
      %p118 = por %p116, %p117
      %p119 = scmp.ne.s32.totalorder %s107, %s108
      %p120 = scmp.eq.s32.totalorder %s35, 1
      %p121 = por %p119, %p120
      %p123 = scmp.ne.s32.totalorder %s108, %s122
      %p124 = scmp.eq.s32.totalorder %s35, 0
      %p125 = por %p123, %p124
      %s127 = sadd.s32 %s126, 1
      %p130 = scmp.eq.s32.totalorder %s29, 1
      %p131 = scmp.ne.s32.totalorder %s126, %s128
      %p132 = scmp.eq.s32.totalorder %s29, 0
      %p133 = por %p131, %p132
      %p134 = scmp.ne.s32.totalorder %s126, %s128
      %p135 = scmp.eq.s32.totalorder %s34, 1
      %p136 = por %p134, %p135
      %p137 = scmp.ne.s32.totalorder %s128, %s129
      %p138 = scmp.eq.s32.totalorder %s34, 0
      %p139 = por %p137, %p138
      %p140 = scmp.ne.s32.totalorder %s128, %s129
      %p141 = scmp.eq.s32.totalorder %s35, 1
      %p142 = por %p140, %p141
      %p144 = scmp.ne.s32.totalorder %s129, %s143
      %p145 = scmp.eq.s32.totalorder %s35, 0
      %p146 = por %p144, %p145
      %s147 = ssub.s32 %s29, %s36
      %p148 = scmp.eq.s32.totalorder %s147, 0
      %s150 = sadd.s32 %s149, 1
      %s151 = scalar_select %p148, %s149, %s150
      %p154 = pneg %p148
      %p155 = scmp.eq.s32.totalorder %s29, 1
      %p156 = por %p154, %p155
      %p157 = scmp.ne.s32.totalorder %s149, %s152
      %p158 = scmp.eq.s32.totalorder %s29, 0
      %p159 = por %p157, %p158
      %p160 = scmp.ne.s32.totalorder %s149, %s152
      %p161 = scmp.eq.s32.totalorder %s34, 1
      %p162 = por %p160, %p161
      %p163 = scmp.ne.s32.totalorder %s152, %s153
      %p164 = scmp.eq.s32.totalorder %s34, 0
      %p165 = por %p163, %p164
      %p166 = scmp.ne.s32.totalorder %s152, %s153
      %p167 = scmp.eq.s32.totalorder %s35, 1
      %p168 = por %p166, %p167
      %p170 = scmp.ne.s32.totalorder %s153, %s169
      %p171 = scmp.eq.s32.totalorder %s35, 0
      %p172 = por %p170, %p171
      %s173 = ssub.s32 %s29, %s36
      %p174 = scmp.eq.s32.totalorder %s173, 0
      %s176 = sadd.s32 %s175, 1
      %s177 = scalar_select %p174, %s175, %s176
      %p180 = pneg %p174
      %p181 = scmp.eq.s32.totalorder %s29, 1
      %p182 = por %p180, %p181
      %p183 = scmp.ne.s32.totalorder %s175, %s178
      %p184 = scmp.eq.s32.totalorder %s29, 0
      %p185 = por %p183, %p184
      %p186 = scmp.ne.s32.totalorder %s175, %s178
      %p187 = scmp.eq.s32.totalorder %s34, 1
      %p188 = por %p186, %p187
      %p189 = scmp.ne.s32.totalorder %s178, %s179
      %p190 = scmp.eq.s32.totalorder %s34, 0
      %p191 = por %p189, %p190
      %p192 = scmp.ne.s32.totalorder %s178, %s179
      %p193 = scmp.eq.s32.totalorder %s35, 1
      %p194 = por %p192, %p193
      %p196 = scmp.ne.s32.totalorder %s179, %s195
      %p197 = scmp.eq.s32.totalorder %s35, 0
      %p198 = por %p196, %p197
      %s199 = ssub.s32 %s29, %s36
      %p200 = scmp.eq.s32.totalorder %s199, 0
      %s202 = sadd.s32 %s201, 1
      %s203 = scalar_select %p200, %s201, %s202
      %p206 = pneg %p200
      %p207 = scmp.eq.s32.totalorder %s29, 1
      %p208 = por %p206, %p207
      %p209 = scmp.ne.s32.totalorder %s201, %s204
      %p210 = scmp.eq.s32.totalorder %s29, 0
      %p211 = por %p209, %p210
      %p212 = scmp.ne.s32.totalorder %s201, %s204
      %p213 = scmp.eq.s32.totalorder %s34, 1
      %p214 = por %p212, %p213
      %p215 = scmp.ne.s32.totalorder %s204, %s205
      %p216 = scmp.eq.s32.totalorder %s34, 0
      %p217 = por %p215, %p216
      %p218 = scmp.ne.s32.totalorder %s204, %s205
      %p219 = scmp.eq.s32.totalorder %s35, 1
      %p220 = por %p218, %p219
      %p222 = scmp.ne.s32.totalorder %s205, %s221
      %p223 = scmp.eq.s32.totalorder %s35, 0
      %p224 = por %p222, %p223
      %s226 = sadd.s32 %s225, 1
      %p229 = scmp.eq.s32.totalorder %s29, 1
      %p230 = scmp.ne.s32.totalorder %s225, %s227
      %p231 = scmp.eq.s32.totalorder %s29, 0
      %p232 = por %p230, %p231
      %p233 = scmp.ne.s32.totalorder %s225, %s227
      %p234 = scmp.eq.s32.totalorder %s34, 1
      %p235 = por %p233, %p234
      %p236 = scmp.ne.s32.totalorder %s227, %s228
      %p237 = scmp.eq.s32.totalorder %s34, 0
      %p238 = por %p236, %p237
      %p239 = scmp.ne.s32.totalorder %s227, %s228
      %p240 = scmp.eq.s32.totalorder %s35, 1
      %p241 = por %p239, %p240
      %p243 = scmp.ne.s32.totalorder %s228, %s242
      %p244 = scmp.eq.s32.totalorder %s35, 0
      %p245 = por %p243, %p244
      %p246 = scmp.le.s32.totalorder 1, %s29
      %p247 = scmp.lt.s32.totalorder %s29, 3
      %p248 = pnand %p246, %p247
      %p249 = pneg %p248
      // Predicated region
      $region9: #{tpu_custom_call.1} parent=5 // pred_check
        _
      $region10: #{tpu_custom_call.1} parent=5 // pred_check_branch
        %251 = sbr.rel (%p248) target = $region12
      $region11: #{tpu_custom_call.1} parent=5 // pred_region
        %s252 = ssub.s32 %s29, 1
        // Predicated region
        $region13: #{tpu_custom_call.1} parent=11 // pred_check
          %p253 = pneg %p76
        $region14: #{tpu_custom_call.1} parent=11 // pred_check_branch
          %255 = sbr.rel (%p253) target = $region16
        $region15: #{tpu_custom_call.1} parent=11 // pred_region
          %257 = vsyncadd [#allocation8], 0
          %s258 = sshll.u32 %s1, 4
          %s259 = int_to_ptr.hbm [resolvable:$true] %s258
          %s260 = sshll.u32 [#allocation7], 4
          %s261 = int_to_ptr.vmem [resolvable:$true] %s260
          %266 = dma.hbm_to_vmem [thread:$0]  %s259, 1024, %s261, [#allocation8], 64, 64, 4
        $region16: #{tpu_custom_call.1} parent=11 // pred_fallthru
          _
        // Predicated region
        $region17: #{tpu_custom_call.1} parent=11 // pred_check
          %p267 = pneg %p97
        $region18: #{tpu_custom_call.1} parent=11 // pred_check_branch
          %269 = sbr.rel (%p267) target = $region20
        $region19: #{tpu_custom_call.1} parent=11 // pred_region
          _
        $region20: #{tpu_custom_call.1} parent=11 // pred_fallthru
          _
        // Predicated region
        $region21: #{tpu_custom_call.1} parent=11 // pred_check
          %p270 = pneg %p118
        $region22: #{tpu_custom_call.1} parent=11 // pred_check_branch
          %272 = sbr.rel (%p270) target = $region24
        $region23: #{tpu_custom_call.1} parent=11 // pred_region
          %274 = vsyncadd [#allocation8], 0
          %s275 = sshll.u32 %s3, 4
          %s276 = int_to_ptr.hbm [resolvable:$true] %s275
          %s277 = sshll.u32 [#allocation9], 4
          %s278 = int_to_ptr.vmem [resolvable:$true] %s277
          %283 = dma.hbm_to_vmem [thread:$0]  %s276, 2048, %s278, [#allocation8], 128, 128, 8
        $region24: #{tpu_custom_call.1} parent=11 // pred_fallthru
          _
        // Predicated region
        $region25: #{tpu_custom_call.1} parent=11 // pred_check
          %p284 = pneg %p139
        $region26: #{tpu_custom_call.1} parent=11 // pred_check_branch
          %286 = sbr.rel (%p284) target = $region28
        $region27: #{tpu_custom_call.1} parent=11 // pred_region
          _
        $region28: #{tpu_custom_call.1} parent=11 // pred_fallthru
          _
      $region12: #{tpu_custom_call.1} parent=5 // pred_fallthru
        _
      %p287 = scmp.lt.s32.totalorder %s29, 2
      // Predicated region
      $region29: #{tpu_custom_call.1} parent=5 // pred_check
        %p288 = pneg %p287
      $region30: #{tpu_custom_call.1} parent=5 // pred_check_branch
        %290 = sbr.rel (%p288) target = $region32
      $region31: #{tpu_custom_call.1} parent=5 // pred_region
        // Predicated region
        $region33: #{tpu_custom_call.1} parent=31 // pred_check
          %p291 = pneg %p49
        $region34: #{tpu_custom_call.1} parent=31 // pred_check_branch
          %293 = sbr.rel (%p291) target = $region36
        $region35: #{tpu_custom_call.1} parent=31 // pred_region
          %s294 = sand.u32 %s39, 1
          %s295 = scalar_lea.sflag [#allocation4], %s294
          %s296 = sand.u32 %s39, 1
          %s297 = smul.addr %s296, 128
          %s298 = scalar_lea.vmem [#allocation3], %s297
          %s299 = smul.u32 16, %s29
          %301 = vsyncadd %s295, 0
          %s302 = smul.addr %s299, 8
          %s303 = scalar_lea.hbm %s0, %s302
          %s304 = sshll.u32 %s303, 4
          %s305 = int_to_ptr.hbm [resolvable:$true] %s304
          %s306 = sshll.u32 %s298, 4
          %s307 = int_to_ptr.vmem [resolvable:$true] %s306
          %312 = dma.hbm_to_vmem [thread:$0]  %s305, 2048, %s307, %s295, 128, 128, 8
        $region36: #{tpu_custom_call.1} parent=31 // pred_fallthru
          _
        // Predicated region
        $region37: #{tpu_custom_call.1} parent=31 // pred_check
          %p313 = pneg %p159
        $region38: #{tpu_custom_call.1} parent=31 // pred_check_branch
          %315 = sbr.rel (%p313) target = $region40
        $region39: #{tpu_custom_call.1} parent=31 // pred_region
          %s316 = sand.u32 %s149, 1
          %s317 = scalar_lea.sflag [#allocation11], %s316
          %s318 = sand.u32 %s149, 1
          %s319 = smul.addr %s318, 128
          %s320 = scalar_lea.vmem [#allocation10], %s319
          %s321 = smul.u32 16, %s29
          %323 = vsyncadd %s317, 0
          %s324 = smul.addr %s321, 8
          %s325 = scalar_lea.hbm %s5, %s324
          %s326 = sshll.u32 %s325, 4
          %s327 = int_to_ptr.hbm [resolvable:$true] %s326
          %s328 = sshll.u32 %s320, 4
          %s329 = int_to_ptr.vmem [resolvable:$true] %s328
          %334 = dma.hbm_to_vmem [thread:$0]  %s327, 2048, %s329, %s317, 128, 128, 8
        $region40: #{tpu_custom_call.1} parent=31 // pred_fallthru
          _
      $region32: #{tpu_custom_call.1} parent=5 // pred_fallthru
        _
      %p335 = scmp.le.s32.totalorder 1, %s29
      %p336 = scmp.lt.s32.totalorder %s29, 3
      %p337 = pnand %p335, %p336
      %p338 = pneg %p337
      // Predicated region
      $region41: #{tpu_custom_call.1} parent=5 // pred_check
        _
      $region42: #{tpu_custom_call.1} parent=5 // pred_check_branch
        %340 = sbr.rel (%p337) target = $region44
      $region43: #{tpu_custom_call.1} parent=5 // pred_region
        %s341 = ssub.s32 %s29, 1
        %s342 = sand.u32 %s42, 1
        %s343 = scalar_lea.sflag [#allocation4], %s342
        %s344 = sand.u32 %s42, 1
        %s345 = smul.addr %s344, 128
        %s346 = scalar_lea.vmem [#allocation3], %s345
        // Predicated region
        $region45: #{tpu_custom_call.1} parent=43 // pred_check
          %p347 = pneg %p55
        $region46: #{tpu_custom_call.1} parent=43 // pred_check_branch
          %349 = sbr.rel (%p347) target = $region48
        $region47: #{tpu_custom_call.1} parent=43 // pred_region
          %351 = dma.done %s343, 2048
        $region48: #{tpu_custom_call.1} parent=43 // pred_fallthru
          _
        // Predicated region
        $region49: #{tpu_custom_call.1} parent=43 // pred_check
          %p352 = pneg %p76
        $region50: #{tpu_custom_call.1} parent=43 // pred_check_branch
          %354 = sbr.rel (%p352) target = $region52
        $region51: #{tpu_custom_call.1} parent=43 // pred_region
          %356 = dma.done [#allocation8], 1024
        $region52: #{tpu_custom_call.1} parent=43 // pred_fallthru
          _
        // Predicated region
        $region53: #{tpu_custom_call.1} parent=43 // pred_check
          %p357 = pneg %p118
        $region54: #{tpu_custom_call.1} parent=43 // pred_check_branch
          %359 = sbr.rel (%p357) target = $region56
        $region55: #{tpu_custom_call.1} parent=43 // pred_region
          %361 = dma.done [#allocation8], 2048
        $region56: #{tpu_custom_call.1} parent=43 // pred_fallthru
          _
        %s362 = sand.u32 %s152, 1
        %s363 = scalar_lea.sflag [#allocation11], %s362
        %s364 = sand.u32 %s152, 1
        %s365 = smul.addr %s364, 128
        %s366 = scalar_lea.vmem [#allocation10], %s365
        // Predicated region
        $region57: #{tpu_custom_call.1} parent=43 // pred_check
          %p367 = pneg %p165
        $region58: #{tpu_custom_call.1} parent=43 // pred_check_branch
          %369 = sbr.rel (%p367) target = $region60
        $region59: #{tpu_custom_call.1} parent=43 // pred_region
          %371 = dma.done %s363, 2048
        $region60: #{tpu_custom_call.1} parent=43 // pred_fallthru
          _
        %s372 = sand.u32 %s42, 1
        %s373 = scalar_lea.sflag [#allocation4], %s372
        %s374 = sand.u32 %s42, 1
        %s375 = smul.addr %s374, 128
        %s376 = scalar_lea.vmem [#allocation3], %s375
        %p377 = pneg %p55
        %p378 = pneg %p52
        %p379 = pneg %p76
        %p380 = pneg %p73
        %p381 = pneg %p97
        %p382 = pneg %p94
        %p383 = pneg %p118
        %p384 = pneg %p115
        %p385 = pneg %p139
        %p386 = pneg %p136
        %s387 = sand.u32 %s152, 1
        %s388 = scalar_lea.sflag [#allocation11], %s387
        %s389 = sand.u32 %s152, 1
        %s390 = smul.addr %s389, 128
        %s391 = scalar_lea.vmem [#allocation10], %s390
        %p392 = pneg %p165
        %p393 = pneg %p162
        %p394 = pneg %p191
        %p395 = pneg %p188
        %s396 = sand.u32 %s178, 1
        %s397 = scalar_lea.sflag [#allocation5], %s396
        %s398 = sand.u32 %s178, 1
        %s399 = smul.addr %s398, 128
        %s400 = scalar_lea.vmem [#allocation12], %s399
        %p401 = pneg %p217
        %p402 = pneg %p214
        %s403 = sand.u32 %s204, 1
        %s404 = scalar_lea.sflag [#allocation14], %s403
        %s405 = sand.u32 %s204, 1
        %s406 = smul.addr %s405, 128
        %s407 = scalar_lea.vmem [#allocation13], %s406
        %p408 = pneg %p238
        %p409 = pneg %p235
        %s410 = smul.u32 16, %s34
        %s411 = smul.u32 16, %s34
        %s412 = smul.u32 16, %s34
        %s413 = smul.u32 16, %s34
        %p414 = scmp.eq.s32.totalorder %s34, 0
        // Predicated region
        $region61: #{tpu_custom_call.1} parent=43 // pred_check
          %p415 = pneg %p414
        $region62: #{tpu_custom_call.1} parent=43 // pred_check_branch
          %417 = sbr.rel (%p415) target = $region64
        $region63: #{tpu_custom_call.1} parent=43 // pred_region
          %s418 = scalar_lea.smem [#allocation2], 0
          %419 = sst [smem:[%s418]] 0.0
        $region64: #{tpu_custom_call.1} parent=43 // pred_fallthru
          _
        %v420 = vld [vmem:[%s346] sm:$0xff]
        %v421 = vld [vmem:[%s346 + $0x8] sm:$0xff]
        %v422 = vld [vmem:[%s346 + $0x10] sm:$0xff]
        %v423 = vld [vmem:[%s346 + $0x18] sm:$0xff]
        %v424 = vld [vmem:[%s346 + $0x20] sm:$0xff]
        %v425 = vld [vmem:[%s346 + $0x28] sm:$0xff]
        %v426 = vld [vmem:[%s346 + $0x30] sm:$0xff]
        %v427 = vld [vmem:[%s346 + $0x38] sm:$0xff]
        %v428 = vld [vmem:[%s346 + $0x40] sm:$0xff]
        %v429 = vld [vmem:[%s346 + $0x48] sm:$0xff]
        %v430 = vld [vmem:[%s346 + $0x50] sm:$0xff]
        %v431 = vld [vmem:[%s346 + $0x58] sm:$0xff]
        %v432 = vld [vmem:[%s346 + $0x60] sm:$0xff]
        %v433 = vld [vmem:[%s346 + $0x68] sm:$0xff]
        %v434 = vld [vmem:[%s346 + $0x70] sm:$0xff]
        %v435 = vld [vmem:[%s346 + $0x78] sm:$0xff]
        %v436 = vpack.c.bf16 %v421, %v420
        %v437 = vpack.c.bf16 %v423, %v422
        %v438 = vpack.c.bf16 %v425, %v424
        %v439 = vpack.c.bf16 %v427, %v426
        %v440 = vpack.c.bf16 %v429, %v428
        %v441 = vpack.c.bf16 %v431, %v430
        %v442 = vpack.c.bf16 %v433, %v432
        %v443 = vpack.c.bf16 %v435, %v434
        %v444 = vld [vmem:[#allocation7] sm:$0xf]
        %v445 = vld [vmem:[#allocation7 + $0x4] sm:$0xf]
        %v446 = vld [vmem:[#allocation7 + $0x8] sm:$0xf]
        %v447 = vld [vmem:[#allocation7 + $0xc] sm:$0xf]
        %v448 = vld [vmem:[#allocation7 + $0x10] sm:$0xf]
        %v449 = vld [vmem:[#allocation7 + $0x14] sm:$0xf]
        %v450 = vld [vmem:[#allocation7 + $0x18] sm:$0xf]
        %v451 = vld [vmem:[#allocation7 + $0x1c] sm:$0xf]
        %v452 = vld [vmem:[#allocation7 + $0x20] sm:$0xf]
        %v453 = vld [vmem:[#allocation7 + $0x24] sm:$0xf]
        %v454 = vld [vmem:[#allocation7 + $0x28] sm:$0xf]
        %v455 = vld [vmem:[#allocation7 + $0x2c] sm:$0xf]
        %v456 = vld [vmem:[#allocation7 + $0x30] sm:$0xf]
        %v457 = vld [vmem:[#allocation7 + $0x34] sm:$0xf]
        %v458 = vld [vmem:[#allocation7 + $0x38] sm:$0xf]
        %v459 = vld [vmem:[#allocation7 + $0x3c] sm:$0xf]
        %v460 = vld [vmem:[%s2] sm:$0x1]
        %v462 = vperm.slane %v460, 0
        %v480 = vunpack.c.l.b16 %v444
        %v481 = vunpack.c.l.b16 %v445
        %v482 = vunpack.c.l.b16 %v446
        %v483 = vunpack.c.l.b16 %v447
        %v484 = vunpack.c.l.b16 %v448
        %v485 = vunpack.c.l.b16 %v449
        %v486 = vunpack.c.l.b16 %v450
        %v487 = vunpack.c.l.b16 %v451
        %v488 = vunpack.c.l.b16 %v452
        %v489 = vunpack.c.l.b16 %v453
        %v490 = vunpack.c.l.b16 %v454
        %v491 = vunpack.c.l.b16 %v455
        %v492 = vunpack.c.l.b16 %v456
        %v493 = vunpack.c.l.b16 %v457
        %v494 = vunpack.c.l.b16 %v458
        %v495 = vunpack.c.l.b16 %v459
        %v496 = vpack.c.b16 %v481, %v480
        %v497 = vpack.c.b16 %v483, %v482
        %v498 = vpack.c.b16 %v485, %v484
        %v499 = vpack.c.b16 %v487, %v486
        %v500 = vpack.c.b16 %v489, %v488
        %v501 = vpack.c.b16 %v491, %v490
        %v502 = vpack.c.b16 %v493, %v492
        %v503 = vpack.c.b16 %v495, %v494
        %512 = vmatpush.bf16.msra.mxu0 %v503
        %513 = vmatpush.bf16.msra.mxu0 %v502
        %514 = vmatpush.bf16.msra.mxu0 %v501
        %515 = vmatpush.bf16.msra.mxu0 %v500
        %516 = vmatpush.bf16.msra.mxu0 %v499
        %517 = vmatpush.bf16.msra.mxu0 %v498
        %518 = vmatpush.bf16.msra.mxu0 %v497
        %519 = vmatpush.bf16.msra.mxu0 %v496
        %520 = vmatmul.bf16.gmra.mxu0 %v436
        %v521 = vpop.f32.mrf.mxu0
        %v522 = vadd.f32 %v462, %v521
        %v523 = vpop.f32.mrf.mxu0
        %v524 = vadd.f32 %v462, %v523
        %525 = vmatmul.bf16.gmra.mxu0 %v437
        %v526 = vpop.f32.mrf.mxu0
        %v527 = vadd.f32 %v462, %v526
        %v528 = vpop.f32.mrf.mxu0
        %v529 = vadd.f32 %v462, %v528
        %530 = vmatmul.bf16.gmra.mxu0 %v438
        %v531 = vpop.f32.mrf.mxu0
        %v532 = vadd.f32 %v462, %v531
        %v533 = vpop.f32.mrf.mxu0
        %v534 = vadd.f32 %v462, %v533
        %535 = vmatmul.bf16.gmra.mxu0 %v439
        %v536 = vpop.f32.mrf.mxu0
        %v537 = vadd.f32 %v462, %v536
        %v538 = vpop.f32.mrf.mxu0
        %v539 = vadd.f32 %v462, %v538
        %540 = vmatmul.bf16.gmra.mxu0 %v440
        %v541 = vpop.f32.mrf.mxu0
        %v542 = vadd.f32 %v462, %v541
        %v543 = vpop.f32.mrf.mxu0
        %v544 = vadd.f32 %v462, %v543
        %545 = vmatmul.bf16.gmra.mxu0 %v441
        %v546 = vpop.f32.mrf.mxu0
        %v547 = vadd.f32 %v462, %v546
        %v548 = vpop.f32.mrf.mxu0
        %v549 = vadd.f32 %v462, %v548
        %550 = vmatmul.bf16.gmra.mxu0 %v442
        %v551 = vpop.f32.mrf.mxu0
        %v552 = vadd.f32 %v462, %v551
        %v553 = vpop.f32.mrf.mxu0
        %v554 = vadd.f32 %v462, %v553
        %555 = vmatmul.bf16.gmra.mxu0 %v443
        %v556 = vpop.f32.mrf.mxu0
        %v557 = vadd.f32 %v462, %v556
        %v558 = vpop.f32.mrf.mxu0
        %v559 = vadd.f32 %v462, %v558
        %560 = vdwg.mxu0
        %v561 = vmax.f32 %v522, 0.0
        %v562 = vmax.f32 %v524, 0.0
        %v563 = vmax.f32 %v527, 0.0
        %v564 = vmax.f32 %v529, 0.0
        %v565 = vmax.f32 %v532, 0.0
        %v566 = vmax.f32 %v534, 0.0
        %v567 = vmax.f32 %v537, 0.0
        %v568 = vmax.f32 %v539, 0.0
        %v569 = vmax.f32 %v542, 0.0
        %v570 = vmax.f32 %v544, 0.0
        %v571 = vmax.f32 %v547, 0.0
        %v572 = vmax.f32 %v549, 0.0
        %v573 = vmax.f32 %v552, 0.0
        %v574 = vmax.f32 %v554, 0.0
        %v575 = vmax.f32 %v557, 0.0
        %v576 = vmax.f32 %v559, 0.0
        %v577 = vpack.c.bf16 %v562, %v561
        %v578 = vpack.c.bf16 %v564, %v563
        %v579 = vpack.c.bf16 %v566, %v565
        %v580 = vpack.c.bf16 %v568, %v567
        %v581 = vpack.c.bf16 %v570, %v569
        %v582 = vpack.c.bf16 %v572, %v571
        %v583 = vpack.c.bf16 %v574, %v573
        %v584 = vpack.c.bf16 %v576, %v575
        %v585 = vld [vmem:[#allocation9] sm:$0xff]
        %v586 = vld [vmem:[#allocation9 + $0x8] sm:$0xff]
        %v587 = vld [vmem:[#allocation9 + $0x10] sm:$0xff]
        %v588 = vld [vmem:[#allocation9 + $0x18] sm:$0xff]
        %v589 = vld [vmem:[#allocation9 + $0x20] sm:$0xff]
        %v590 = vld [vmem:[#allocation9 + $0x28] sm:$0xff]
        %v591 = vld [vmem:[#allocation9 + $0x30] sm:$0xff]
        %v592 = vld [vmem:[#allocation9 + $0x38] sm:$0xff]
        %v593 = vld [vmem:[#allocation9 + $0x40] sm:$0xff]
        %v594 = vld [vmem:[#allocation9 + $0x48] sm:$0xff]
        %v595 = vld [vmem:[#allocation9 + $0x50] sm:$0xff]
        %v596 = vld [vmem:[#allocation9 + $0x58] sm:$0xff]
        %v597 = vld [vmem:[#allocation9 + $0x60] sm:$0xff]
        %v598 = vld [vmem:[#allocation9 + $0x68] sm:$0xff]
        %v599 = vld [vmem:[#allocation9 + $0x70] sm:$0xff]
        %v600 = vld [vmem:[#allocation9 + $0x78] sm:$0xff]
        %v601 = vld [vmem:[%s4] sm:$0x3]
        %v603 = vperm.slane %v601, 0
        %v604 = vperm.slane %v601, 1
        %v623 = vunpack.c.l.b16 %v585
        %v624 = vunpack.c.h.b16 %v585
        %v625 = vunpack.c.l.b16 %v586
        %v626 = vunpack.c.h.b16 %v586
        %v627 = vunpack.c.l.b16 %v587
        %v628 = vunpack.c.h.b16 %v587
        %v629 = vunpack.c.l.b16 %v588
        %v630 = vunpack.c.h.b16 %v588
        %v631 = vunpack.c.l.b16 %v589
        %v632 = vunpack.c.h.b16 %v589
        %v633 = vunpack.c.l.b16 %v590
        %v634 = vunpack.c.h.b16 %v590
        %v635 = vunpack.c.l.b16 %v591
        %v636 = vunpack.c.h.b16 %v591
        %v637 = vunpack.c.l.b16 %v592
        %v638 = vunpack.c.h.b16 %v592
        %v639 = vunpack.c.l.b16 %v593
        %v640 = vunpack.c.h.b16 %v593
        %v641 = vunpack.c.l.b16 %v594
        %v642 = vunpack.c.h.b16 %v594
        %v643 = vunpack.c.l.b16 %v595
        %v644 = vunpack.c.h.b16 %v595
        %v645 = vunpack.c.l.b16 %v596
        %v646 = vunpack.c.h.b16 %v596
        %v647 = vunpack.c.l.b16 %v597
        %v648 = vunpack.c.h.b16 %v597
        %v649 = vunpack.c.l.b16 %v598
        %v650 = vunpack.c.h.b16 %v598
        %v651 = vunpack.c.l.b16 %v599
        %v652 = vunpack.c.h.b16 %v599
        %v653 = vunpack.c.l.b16 %v600
        %v654 = vunpack.c.h.b16 %v600
        %v655 = vpack.c.b16 %v625, %v623
        %v656 = vpack.c.b16 %v626, %v624
        %v657 = vpack.c.b16 %v629, %v627
        %v658 = vpack.c.b16 %v630, %v628
        %v659 = vpack.c.b16 %v633, %v631
        %v660 = vpack.c.b16 %v634, %v632
        %v661 = vpack.c.b16 %v637, %v635
        %v662 = vpack.c.b16 %v638, %v636
        %v663 = vpack.c.b16 %v641, %v639
        %v664 = vpack.c.b16 %v642, %v640
        %v665 = vpack.c.b16 %v645, %v643
        %v666 = vpack.c.b16 %v646, %v644
        %v667 = vpack.c.b16 %v649, %v647
        %v668 = vpack.c.b16 %v650, %v648
        %v669 = vpack.c.b16 %v653, %v651
        %v670 = vpack.c.b16 %v654, %v652
        %687 = vmatpush.bf16.msra.mxu0 %v669
        %688 = vmatpush.bf16.msra.mxu0 %v667
        %689 = vmatpush.bf16.msra.mxu0 %v665
        %690 = vmatpush.bf16.msra.mxu0 %v663
        %691 = vmatpush.bf16.msra.mxu0 %v661
        %692 = vmatpush.bf16.msra.mxu0 %v659
        %693 = vmatpush.bf16.msra.mxu0 %v657
        %694 = vmatpush.bf16.msra.mxu0 %v655
        %695 = vmatmul.bf16.gmra.mxu0 %v577
        %v696 = vpop.f32.mrf.mxu0
        %v697 = vadd.f32 %v603, %v696
        %v698 = vpop.f32.mrf.mxu0
        %v699 = vadd.f32 %v603, %v698
        %700 = vmatmul.bf16.gmra.mxu0 %v578
        %v701 = vpop.f32.mrf.mxu0
        %v702 = vadd.f32 %v603, %v701
        %v703 = vpop.f32.mrf.mxu0
        %v704 = vadd.f32 %v603, %v703
        %705 = vmatmul.bf16.gmra.mxu0 %v579
        %v706 = vpop.f32.mrf.mxu0
        %v707 = vadd.f32 %v603, %v706
        %v708 = vpop.f32.mrf.mxu0
        %v709 = vadd.f32 %v603, %v708
        %710 = vmatmul.bf16.gmra.mxu0 %v580
        %v711 = vpop.f32.mrf.mxu0
        %v712 = vadd.f32 %v603, %v711
        %v713 = vpop.f32.mrf.mxu0
        %v714 = vadd.f32 %v603, %v713
        %715 = vmatmul.bf16.gmra.mxu0 %v581
        %v716 = vpop.f32.mrf.mxu0
        %v717 = vadd.f32 %v603, %v716
        %v718 = vpop.f32.mrf.mxu0
        %v719 = vadd.f32 %v603, %v718
        %720 = vmatmul.bf16.gmra.mxu0 %v582
        %v721 = vpop.f32.mrf.mxu0
        %v722 = vadd.f32 %v603, %v721
        %v723 = vpop.f32.mrf.mxu0
        %v724 = vadd.f32 %v603, %v723
        %725 = vmatmul.bf16.gmra.mxu0 %v583
        %v726 = vpop.f32.mrf.mxu0
        %v727 = vadd.f32 %v603, %v726
        %v728 = vpop.f32.mrf.mxu0
        %v729 = vadd.f32 %v603, %v728
        %730 = vmatmul.bf16.gmra.mxu0 %v584
        %v731 = vpop.f32.mrf.mxu0
        %v732 = vadd.f32 %v603, %v731
        %v733 = vpop.f32.mrf.mxu0
        %v734 = vadd.f32 %v603, %v733
        %735 = vdwg.mxu0
        %736 = vmatpush.bf16.msra.mxu0 %v670
        %737 = vmatpush.bf16.msra.mxu0 %v668
        %738 = vmatpush.bf16.msra.mxu0 %v666
        %739 = vmatpush.bf16.msra.mxu0 %v664
        %740 = vmatpush.bf16.msra.mxu0 %v662
        %741 = vmatpush.bf16.msra.mxu0 %v660
        %742 = vmatpush.bf16.msra.mxu0 %v658
        %743 = vmatpush.bf16.msra.mxu0 %v656
        %744 = vmatmul.bf16.gmra.mxu0 %v577
        %v745 = vpop.f32.mrf.mxu0
        %v746 = vadd.f32 %v604, %v745
        %v747 = vpop.f32.mrf.mxu0
        %v748 = vadd.f32 %v604, %v747
        %749 = vmatmul.bf16.gmra.mxu0 %v578
        %v750 = vpop.f32.mrf.mxu0
        %v751 = vadd.f32 %v604, %v750
        %v752 = vpop.f32.mrf.mxu0
        %v753 = vadd.f32 %v604, %v752
        %754 = vmatmul.bf16.gmra.mxu0 %v579
        %v755 = vpop.f32.mrf.mxu0
        %v756 = vadd.f32 %v604, %v755
        %v757 = vpop.f32.mrf.mxu0
        %v758 = vadd.f32 %v604, %v757
        %759 = vmatmul.bf16.gmra.mxu0 %v580
        %v760 = vpop.f32.mrf.mxu0
        %v761 = vadd.f32 %v604, %v760
        %v762 = vpop.f32.mrf.mxu0
        %v763 = vadd.f32 %v604, %v762
        %764 = vmatmul.bf16.gmra.mxu0 %v581
        %v765 = vpop.f32.mrf.mxu0
        %v766 = vadd.f32 %v604, %v765
        %v767 = vpop.f32.mrf.mxu0
        %v768 = vadd.f32 %v604, %v767
        %769 = vmatmul.bf16.gmra.mxu0 %v582
        %v770 = vpop.f32.mrf.mxu0
        %v771 = vadd.f32 %v604, %v770
        %v772 = vpop.f32.mrf.mxu0
        %v773 = vadd.f32 %v604, %v772
        %774 = vmatmul.bf16.gmra.mxu0 %v583
        %v775 = vpop.f32.mrf.mxu0
        %v776 = vadd.f32 %v604, %v775
        %v777 = vpop.f32.mrf.mxu0
        %v778 = vadd.f32 %v604, %v777
        %779 = vmatmul.bf16.gmra.mxu0 %v584
        %v780 = vpop.f32.mrf.mxu0
        %v781 = vadd.f32 %v604, %v780
        %v782 = vpop.f32.mrf.mxu0
        %v783 = vadd.f32 %v604, %v782
        %784 = vdwg.mxu0
        %v785 = vmul.f32 %v746, 0.5
        %v786 = vmul.f32 %v748, 0.5
        %v787 = vmul.f32 %v751, 0.5
        %v788 = vmul.f32 %v753, 0.5
        %v789 = vmul.f32 %v756, 0.5
        %v790 = vmul.f32 %v758, 0.5
        %v791 = vmul.f32 %v761, 0.5
        %v792 = vmul.f32 %v763, 0.5
        %v793 = vmul.f32 %v766, 0.5
        %v794 = vmul.f32 %v768, 0.5
        %v795 = vmul.f32 %v771, 0.5
        %v796 = vmul.f32 %v773, 0.5
        %v797 = vmul.f32 %v776, 0.5
        %v798 = vmul.f32 %v778, 0.5
        %v799 = vmul.f32 %v781, 0.5
        %v800 = vmul.f32 %v783, 0.5
        %v801 = vmul.f32 %v785, 1.442695
        %v802 = vpow.pop %v801
        %v803 = vmul.f32 %v786, 1.442695
        %v804 = vpow.pop %v803
        %v805 = vmul.f32 %v787, 1.442695
        %v806 = vpow.pop %v805
        %v807 = vmul.f32 %v788, 1.442695
        %v808 = vpow.pop %v807
        %v809 = vmul.f32 %v789, 1.442695
        %v810 = vpow.pop %v809
        %v811 = vmul.f32 %v790, 1.442695
        %v812 = vpow.pop %v811
        %v813 = vmul.f32 %v791, 1.442695
        %v814 = vpow.pop %v813
        %v815 = vmul.f32 %v792, 1.442695
        %v816 = vpow.pop %v815
        %v817 = vmul.f32 %v793, 1.442695
        %v818 = vpow.pop %v817
        %v819 = vmul.f32 %v794, 1.442695
        %v820 = vpow.pop %v819
        %v821 = vmul.f32 %v795, 1.442695
        %v822 = vpow.pop %v821
        %v823 = vmul.f32 %v796, 1.442695
        %v824 = vpow.pop %v823
        %v825 = vmul.f32 %v797, 1.442695
        %v826 = vpow.pop %v825
        %v827 = vmul.f32 %v798, 1.442695
        %v828 = vpow.pop %v827
        %v829 = vmul.f32 %v799, 1.442695
        %v830 = vpow.pop %v829
        %v831 = vmul.f32 %v800, 1.442695
        %v832 = vpow.pop %v831
        %v833 = vld [vmem:[%s366] sm:$0xff]
        %v834 = vld [vmem:[%s366 + $0x8] sm:$0xff]
        %v835 = vld [vmem:[%s366 + $0x10] sm:$0xff]
        %v836 = vld [vmem:[%s366 + $0x18] sm:$0xff]
        %v837 = vld [vmem:[%s366 + $0x20] sm:$0xff]
        %v838 = vld [vmem:[%s366 + $0x28] sm:$0xff]
        %v839 = vld [vmem:[%s366 + $0x30] sm:$0xff]
        %v840 = vld [vmem:[%s366 + $0x38] sm:$0xff]
        %v841 = vld [vmem:[%s366 + $0x40] sm:$0xff]
        %v842 = vld [vmem:[%s366 + $0x48] sm:$0xff]
        %v843 = vld [vmem:[%s366 + $0x50] sm:$0xff]
        %v844 = vld [vmem:[%s366 + $0x58] sm:$0xff]
        %v845 = vld [vmem:[%s366 + $0x60] sm:$0xff]
        %v846 = vld [vmem:[%s366 + $0x68] sm:$0xff]
        %v847 = vld [vmem:[%s366 + $0x70] sm:$0xff]
        %v848 = vld [vmem:[%s366 + $0x78] sm:$0xff]
        %v849 = vmul.f32 %v833, %v802
        %v850 = vmul.f32 %v834, %v804
        %v851 = vmul.f32 %v835, %v806
        %v852 = vmul.f32 %v836, %v808
        %v853 = vmul.f32 %v837, %v810
        %v854 = vmul.f32 %v838, %v812
        %v855 = vmul.f32 %v839, %v814
        %v856 = vmul.f32 %v840, %v816
        %v857 = vmul.f32 %v841, %v818
        %v858 = vmul.f32 %v842, %v820
        %v859 = vmul.f32 %v843, %v822
        %v860 = vmul.f32 %v844, %v824
        %v861 = vmul.f32 %v845, %v826
        %v862 = vmul.f32 %v846, %v828
        %v863 = vmul.f32 %v847, %v830
        %v864 = vmul.f32 %v848, %v832
        %v865 = vadd.f32 %v697, %v849
        %v866 = vadd.f32 %v699, %v850
        %v867 = vadd.f32 %v702, %v851
        %v868 = vadd.f32 %v704, %v852
        %v869 = vadd.f32 %v707, %v853
        %v870 = vadd.f32 %v709, %v854
        %v871 = vadd.f32 %v712, %v855
        %v872 = vadd.f32 %v714, %v856
        %v873 = vadd.f32 %v717, %v857
        %v874 = vadd.f32 %v719, %v858
        %v875 = vadd.f32 %v722, %v859
        %v876 = vadd.f32 %v724, %v860
        %v877 = vadd.f32 %v727, %v861
        %v878 = vadd.f32 %v729, %v862
        %v879 = vadd.f32 %v732, %v863
        %v880 = vadd.f32 %v734, %v864
        %881 = vst [vmem:[%s400] sm:$0xff] %v865
        %882 = vst [vmem:[%s400 + $0x8] sm:$0xff] %v866
        %883 = vst [vmem:[%s400 + $0x10] sm:$0xff] %v867
        %884 = vst [vmem:[%s400 + $0x18] sm:$0xff] %v868
        %885 = vst [vmem:[%s400 + $0x20] sm:$0xff] %v869
        %886 = vst [vmem:[%s400 + $0x28] sm:$0xff] %v870
        %887 = vst [vmem:[%s400 + $0x30] sm:$0xff] %v871
        %888 = vst [vmem:[%s400 + $0x38] sm:$0xff] %v872
        %889 = vst [vmem:[%s400 + $0x40] sm:$0xff] %v873
        %890 = vst [vmem:[%s400 + $0x48] sm:$0xff] %v874
        %891 = vst [vmem:[%s400 + $0x50] sm:$0xff] %v875
        %892 = vst [vmem:[%s400 + $0x58] sm:$0xff] %v876
        %893 = vst [vmem:[%s400 + $0x60] sm:$0xff] %v877
        %894 = vst [vmem:[%s400 + $0x68] sm:$0xff] %v878
        %895 = vst [vmem:[%s400 + $0x70] sm:$0xff] %v879
        %896 = vst [vmem:[%s400 + $0x78] sm:$0xff] %v880
        %897 = vst [vmem:[%s407] sm:$0xff] %v697
        %898 = vst [vmem:[%s407 + $0x8] sm:$0xff] %v699
        %899 = vst [vmem:[%s407 + $0x10] sm:$0xff] %v702
        %900 = vst [vmem:[%s407 + $0x18] sm:$0xff] %v704
        %901 = vst [vmem:[%s407 + $0x20] sm:$0xff] %v707
        %902 = vst [vmem:[%s407 + $0x28] sm:$0xff] %v709
        %903 = vst [vmem:[%s407 + $0x30] sm:$0xff] %v712
        %904 = vst [vmem:[%s407 + $0x38] sm:$0xff] %v714
        %905 = vst [vmem:[%s407 + $0x40] sm:$0xff] %v717
        %906 = vst [vmem:[%s407 + $0x48] sm:$0xff] %v719
        %907 = vst [vmem:[%s407 + $0x50] sm:$0xff] %v722
        %908 = vst [vmem:[%s407 + $0x58] sm:$0xff] %v724
        %909 = vst [vmem:[%s407 + $0x60] sm:$0xff] %v727
        %910 = vst [vmem:[%s407 + $0x68] sm:$0xff] %v729
        %911 = vst [vmem:[%s407 + $0x70] sm:$0xff] %v732
        %912 = vst [vmem:[%s407 + $0x78] sm:$0xff] %v734
        %v913 = vadd.f32 %v746, 1.0
        %v914 = vadd.f32 %v748, 1.0
        %v915 = vadd.f32 %v751, 1.0
        %v916 = vadd.f32 %v753, 1.0
        %v917 = vadd.f32 %v756, 1.0
        %v918 = vadd.f32 %v758, 1.0
        %v919 = vadd.f32 %v761, 1.0
        %v920 = vadd.f32 %v763, 1.0
        %v921 = vadd.f32 %v766, 1.0
        %v922 = vadd.f32 %v768, 1.0
        %v923 = vadd.f32 %v771, 1.0
        %v924 = vadd.f32 %v773, 1.0
        %v925 = vadd.f32 %v776, 1.0
        %v926 = vadd.f32 %v778, 1.0
        %v927 = vadd.f32 %v781, 1.0
        %v928 = vadd.f32 %v783, 1.0
        %v929 = vmul.f32 %v697, %v697
        %v930 = vmul.f32 %v699, %v699
        %v931 = vmul.f32 %v702, %v702
        %v932 = vmul.f32 %v704, %v704
        %v933 = vmul.f32 %v707, %v707
        %v934 = vmul.f32 %v709, %v709
        %v935 = vmul.f32 %v712, %v712
        %v936 = vmul.f32 %v714, %v714
        %v937 = vmul.f32 %v717, %v717
        %v938 = vmul.f32 %v719, %v719
        %v939 = vmul.f32 %v722, %v722
        %v940 = vmul.f32 %v724, %v724
        %v941 = vmul.f32 %v727, %v727
        %v942 = vmul.f32 %v729, %v729
        %v943 = vmul.f32 %v732, %v732
        %v944 = vmul.f32 %v734, %v734
        %v945 = vsub.f32 %v913, %v929
        %v946 = vsub.f32 %v914, %v930
        %v947 = vsub.f32 %v915, %v931
        %v948 = vsub.f32 %v916, %v932
        %v949 = vsub.f32 %v917, %v933
        %v950 = vsub.f32 %v918, %v934
        %v951 = vsub.f32 %v919, %v935
        %v952 = vsub.f32 %v920, %v936
        %v953 = vsub.f32 %v921, %v937
        %v954 = vsub.f32 %v922, %v938
        %v955 = vsub.f32 %v923, %v939
        %v956 = vsub.f32 %v924, %v940
        %v957 = vsub.f32 %v925, %v941
        %v958 = vsub.f32 %v926, %v942
        %v959 = vsub.f32 %v927, %v943
        %v960 = vsub.f32 %v928, %v944
        %v961 = vmul.f32 %v802, %v802
        %v962 = vmul.f32 %v804, %v804
        %v963 = vmul.f32 %v806, %v806
        %v964 = vmul.f32 %v808, %v808
        %v965 = vmul.f32 %v810, %v810
        %v966 = vmul.f32 %v812, %v812
        %v967 = vmul.f32 %v814, %v814
        %v968 = vmul.f32 %v816, %v816
        %v969 = vmul.f32 %v818, %v818
        %v970 = vmul.f32 %v820, %v820
        %v971 = vmul.f32 %v822, %v822
        %v972 = vmul.f32 %v824, %v824
        %v973 = vmul.f32 %v826, %v826
        %v974 = vmul.f32 %v828, %v828
        %v975 = vmul.f32 %v830, %v830
        %v976 = vmul.f32 %v832, %v832
        %v977 = vsub.f32 %v945, %v961
        %v978 = vsub.f32 %v946, %v962
        %v979 = vsub.f32 %v947, %v963
        %v980 = vsub.f32 %v948, %v964
        %v981 = vsub.f32 %v949, %v965
        %v982 = vsub.f32 %v950, %v966
        %v983 = vsub.f32 %v951, %v967
        %v984 = vsub.f32 %v952, %v968
        %v985 = vsub.f32 %v953, %v969
        %v986 = vsub.f32 %v954, %v970
        %v987 = vsub.f32 %v955, %v971
        %v988 = vsub.f32 %v956, %v972
        %v989 = vsub.f32 %v957, %v973
        %v990 = vsub.f32 %v958, %v974
        %v991 = vsub.f32 %v959, %v975
        %v992 = vsub.f32 %v960, %v976
        %v993 = vlaneseq
        %v994 = vshrl.u32 %v993, 7
        %v995 = vadd.s32 %v994, 8
        %v996 = vadd.s32 %v994, 16
        %v997 = vadd.s32 %v994, 24
        %v998 = vadd.s32 %v994, 32
        %v999 = vadd.s32 %v994, 40
        %v1000 = vadd.s32 %v994, 48
        %v1001 = vadd.s32 %v994, 56
        %v1002 = vadd.s32 %v994, 64
        %v1003 = vadd.s32 %v994, 72
        %v1004 = vadd.s32 %v994, 80
        %v1005 = vadd.s32 %v994, 88
        %v1006 = vadd.s32 %v994, 96
        %v1007 = vadd.s32 %v994, 104
        %v1008 = vadd.s32 %v994, 112
        %v1009 = vadd.s32 %v994, 120
        %s1010 = smul.u32 %s34, 128
        %v1011 = vstv %s1010
        %v1012 = vadd.s32 %v994, %v1011
        %v1013 = vadd.s32 %v995, %v1011
        %v1014 = vadd.s32 %v996, %v1011
        %v1015 = vadd.s32 %v997, %v1011
        %v1016 = vadd.s32 %v998, %v1011
        %v1017 = vadd.s32 %v999, %v1011
        %v1018 = vadd.s32 %v1000, %v1011
        %v1019 = vadd.s32 %v1001, %v1011
        %v1020 = vadd.s32 %v1002, %v1011
        %v1021 = vadd.s32 %v1003, %v1011
        %v1022 = vadd.s32 %v1004, %v1011
        %v1023 = vadd.s32 %v1005, %v1011
        %v1024 = vadd.s32 %v1006, %v1011
        %v1025 = vadd.s32 %v1007, %v1011
        %v1026 = vadd.s32 %v1008, %v1011
        %v1027 = vadd.s32 %v1009, %v1011
        %vm1028 = vcmp.lt.s32.totalorder %v1012, 256
        %vm1029 = vcmp.lt.s32.totalorder %v1013, 256
        %vm1030 = vcmp.lt.s32.totalorder %v1014, 256
        %vm1031 = vcmp.lt.s32.totalorder %v1015, 256
        %vm1032 = vcmp.lt.s32.totalorder %v1016, 256
        %vm1033 = vcmp.lt.s32.totalorder %v1017, 256
        %vm1034 = vcmp.lt.s32.totalorder %v1018, 256
        %vm1035 = vcmp.lt.s32.totalorder %v1019, 256
        %vm1036 = vcmp.lt.s32.totalorder %v1020, 256
        %vm1037 = vcmp.lt.s32.totalorder %v1021, 256
        %vm1038 = vcmp.lt.s32.totalorder %v1022, 256
        %vm1039 = vcmp.lt.s32.totalorder %v1023, 256
        %vm1040 = vcmp.lt.s32.totalorder %v1024, 256
        %vm1041 = vcmp.lt.s32.totalorder %v1025, 256
        %vm1042 = vcmp.lt.s32.totalorder %v1026, 256
        %vm1043 = vcmp.lt.s32.totalorder %v1027, 256
        %v1044 = vsel %vm1028, -0.001953125, 0.0
        %v1045 = vsel %vm1029, -0.001953125, 0.0
        %v1046 = vsel %vm1030, -0.001953125, 0.0
        %v1047 = vsel %vm1031, -0.001953125, 0.0
        %v1048 = vsel %vm1032, -0.001953125, 0.0
        %v1049 = vsel %vm1033, -0.001953125, 0.0
        %v1050 = vsel %vm1034, -0.001953125, 0.0
        %v1051 = vsel %vm1035, -0.001953125, 0.0
        %v1052 = vsel %vm1036, -0.001953125, 0.0
        %v1053 = vsel %vm1037, -0.001953125, 0.0
        %v1054 = vsel %vm1038, -0.001953125, 0.0
        %v1055 = vsel %vm1039, -0.001953125, 0.0
        %v1056 = vsel %vm1040, -0.001953125, 0.0
        %v1057 = vsel %vm1041, -0.001953125, 0.0
        %v1058 = vsel %vm1042, -0.001953125, 0.0
        %v1059 = vsel %vm1043, -0.001953125, 0.0
        %s1060 = sld [smem:[#allocation2]]
        %v1061 = vmul.f32 %v977, %v1044
        %v1062 = vmul.f32 %v978, %v1045
        %v1063 = vmul.f32 %v979, %v1046
        %v1064 = vmul.f32 %v980, %v1047
        %v1065 = vmul.f32 %v981, %v1048
        %v1066 = vmul.f32 %v982, %v1049
        %v1067 = vmul.f32 %v983, %v1050
        %v1068 = vmul.f32 %v984, %v1051
        %v1069 = vmul.f32 %v985, %v1052
        %v1070 = vmul.f32 %v986, %v1053
        %v1071 = vmul.f32 %v987, %v1054
        %v1072 = vmul.f32 %v988, %v1055
        %v1073 = vmul.f32 %v989, %v1056
        %v1074 = vmul.f32 %v990, %v1057
        %v1075 = vmul.f32 %v991, %v1058
        %v1076 = vmul.f32 %v992, %v1059
        %v1077 = vadd.f32 %v1061, %v1062
        %v1078 = vadd.f32 %v1077, %v1063
        %v1079 = vadd.f32 %v1078, %v1064
        %v1080 = vadd.f32 %v1079, %v1065
        %v1081 = vadd.f32 %v1080, %v1066
        %v1082 = vadd.f32 %v1081, %v1067
        %v1083 = vadd.f32 %v1082, %v1068
        %v1084 = vadd.f32 %v1083, %v1069
        %v1085 = vadd.f32 %v1084, %v1070
        %v1086 = vadd.f32 %v1085, %v1071
        %v1087 = vadd.f32 %v1086, %v1072
        %v1088 = vadd.f32 %v1087, %v1073
        %v1089 = vadd.f32 %v1088, %v1074
        %v1090 = vadd.f32 %v1089, %v1075
        %v1091 = vadd.f32 %v1090, %v1076
        %1092 = vadd.xlane.f32.xlu0 %v1091
        %v1093 = vpop.xlane.xlu0 %1092
        %v1094 = vrot.slane %v1093, 4
        %v1095 = vadd.f32 %v1093, %v1094
        %v1096 = vrot.slane %v1095, 2
        %v1097 = vadd.f32 %v1095, %v1096
        %v1098 = vrot.slane %v1097, 1
        %v1099 = vadd.f32 %v1097, %v1098
        %s1100 = vtos %v1099
        %s1101 = sadd.f32 %s1060, %s1100
        %s1102 = scalar_lea.smem [#allocation2], 0
        %1103 = sst [smem:[%s1102]] %s1101
        %p1104 = scmp.eq.s32.totalorder %s34, 1
        // Predicated region
        $region65: #{tpu_custom_call.1} parent=43 // pred_check
          %p1105 = pneg %p1104
        $region66: #{tpu_custom_call.1} parent=43 // pred_check_branch
          %1107 = sbr.rel (%p1105) target = $region68
        $region67: #{tpu_custom_call.1} parent=43 // pred_region
          %s1108 = sld [smem:[#allocation2]]
          %s1109 = scalar_lea.smem [#allocation15], 0
          %1110 = sst [smem:[%s1109]] %s1108
        $region68: #{tpu_custom_call.1} parent=43 // pred_fallthru
          _
        %s1111 = sand.u32 %s178, 1
        %s1112 = scalar_lea.sflag [#allocation5], %s1111
        %s1113 = sand.u32 %s178, 1
        %s1114 = smul.addr %s1113, 128
        %s1115 = scalar_lea.vmem [#allocation12], %s1114
        %s1116 = sand.u32 %s204, 1
        %s1117 = scalar_lea.sflag [#allocation14], %s1116
        %s1118 = sand.u32 %s204, 1
        %s1119 = smul.addr %s1118, 128
        %s1120 = scalar_lea.vmem [#allocation13], %s1119
        // Predicated region
        $region69: #{tpu_custom_call.1} parent=43 // pred_check
          %p1121 = pneg %p188
        $region70: #{tpu_custom_call.1} parent=43 // pred_check_branch
          %1123 = sbr.rel (%p1121) target = $region72
        $region71: #{tpu_custom_call.1} parent=43 // pred_region
          %s1124 = smul.u32 16, %s34
          %1126 = vsyncadd %s1112, 0
          %s1127 = smul.addr %s1124, 8
          %s1128 = scalar_lea.hbm %s6, %s1127
          %s1129 = sshll.u32 %s1115, 4
          %s1130 = int_to_ptr.vmem [resolvable:$true] %s1129
          %s1131 = sshll.u32 %s1128, 4
          %s1132 = int_to_ptr.hbm [resolvable:$true] %s1131
          %1137 = dma.vmem_to_hbm [thread:$0]  %s1130, 2048, %s1132, %s1112, 128, 128, 8
        $region72: #{tpu_custom_call.1} parent=43 // pred_fallthru
          _
        // Predicated region
        $region73: #{tpu_custom_call.1} parent=43 // pred_check
          %p1138 = pneg %p214
        $region74: #{tpu_custom_call.1} parent=43 // pred_check_branch
          %1140 = sbr.rel (%p1138) target = $region76
        $region75: #{tpu_custom_call.1} parent=43 // pred_region
          %s1141 = smul.u32 16, %s34
          %1143 = vsyncadd %s1117, 0
          %s1144 = smul.addr %s1141, 8
          %s1145 = scalar_lea.hbm %s7, %s1144
          %s1146 = sshll.u32 %s1120, 4
          %s1147 = int_to_ptr.vmem [resolvable:$true] %s1146
          %s1148 = sshll.u32 %s1145, 4
          %s1149 = int_to_ptr.hbm [resolvable:$true] %s1148
          %1154 = dma.vmem_to_hbm [thread:$0]  %s1147, 2048, %s1149, %s1117, 128, 128, 8
        $region76: #{tpu_custom_call.1} parent=43 // pred_fallthru
          _
        // Predicated region
        $region77: #{tpu_custom_call.1} parent=43 // pred_check
          %p1155 = pneg %p235
        $region78: #{tpu_custom_call.1} parent=43 // pred_check_branch
          %1157 = sbr.rel (%p1155) target = $region80
        $region79: #{tpu_custom_call.1} parent=43 // pred_region
          %1159 = vsyncadd [#allocation6], 0
          %s1161 = sshll.u32 %s8, 4
          %s1162 = int_to_ptr.hbm [resolvable:$true] %s1161
          %1164 = dma.smem_to_hbm [#allocation15], 16, %s1162, [#allocation6]
        $region80: #{tpu_custom_call.1} parent=43 // pred_fallthru
          _
        // Predicated region
        $region81: #{tpu_custom_call.1} parent=43 // pred_check
          %p1165 = pneg %p235
        $region82: #{tpu_custom_call.1} parent=43 // pred_check_branch
          %1167 = sbr.rel (%p1165) target = $region84
        $region83: #{tpu_custom_call.1} parent=43 // pred_region
          %1169 = dma.done [#allocation6], 16
        $region84: #{tpu_custom_call.1} parent=43 // pred_fallthru
          _
        %1170 = sfence
      $region44: #{tpu_custom_call.1} parent=5 // pred_fallthru
        _
      %p1171 = scmp.le.s32.totalorder 2, %s29
      // Predicated region
      $region85: #{tpu_custom_call.1} parent=5 // pred_check
        %p1172 = pneg %p1171
      $region86: #{tpu_custom_call.1} parent=5 // pred_check_branch
        %1174 = sbr.rel (%p1172) target = $region88
      $region87: #{tpu_custom_call.1} parent=5 // pred_region
        %s1175 = ssub.s32 %s29, 2
        // Predicated region
        $region89: #{tpu_custom_call.1} parent=87 // pred_check
          %p1176 = pneg %p194
        $region90: #{tpu_custom_call.1} parent=87 // pred_check_branch
          %1178 = sbr.rel (%p1176) target = $region92
        $region91: #{tpu_custom_call.1} parent=87 // pred_region
          %s1179 = sand.u32 %s179, 1
          %s1180 = scalar_lea.sflag [#allocation5], %s1179
          %s1181 = sand.u32 %s179, 1
          %s1182 = smul.addr %s1181, 128
          %s1183 = scalar_lea.vmem [#allocation12], %s1182
          %1185 = dma.done %s1180, 2048
        $region92: #{tpu_custom_call.1} parent=87 // pred_fallthru
          _
        // Predicated region
        $region93: #{tpu_custom_call.1} parent=87 // pred_check
          %p1186 = pneg %p220
        $region94: #{tpu_custom_call.1} parent=87 // pred_check_branch
          %1188 = sbr.rel (%p1186) target = $region96
        $region95: #{tpu_custom_call.1} parent=87 // pred_region
          %s1189 = sand.u32 %s205, 1
          %s1190 = scalar_lea.sflag [#allocation14], %s1189
          %s1191 = sand.u32 %s205, 1
          %s1192 = smul.addr %s1191, 128
          %s1193 = scalar_lea.vmem [#allocation13], %s1192
          %1195 = dma.done %s1190, 2048
        $region96: #{tpu_custom_call.1} parent=87 // pred_fallthru
          _
      $region88: #{tpu_custom_call.1} parent=5 // pred_fallthru
        _
    $region6: #{tpu_custom_call.1} parent=1 // loop_footer
      %s33 = sadd.s32 1, %s29
    $region7: #{tpu_custom_call.1} parent=1 // loop_footer_branch
      %28 = sbr.rel target = $region3
    $region8: #{tpu_custom_call.1} parent=1 // loop_exit
      _
    %1196 = vsyncpa [#allocation4], 1
    %s1197 = scalar_lea.sflag [#allocation4], 1
    %1198 = vsyncpa %s1197, 1
    %1199 = vsyncpa [#allocation8], 1
    %1200 = vsyncpa [#allocation11], 1
    %s1201 = scalar_lea.sflag [#allocation11], 1
    %1202 = vsyncpa %s1201, 1
    %1203 = vsyncpa [#allocation5], 1
    %s1204 = scalar_lea.sflag [#allocation5], 1
    %1205 = vsyncpa %s1204, 1
    %1206 = vsyncpa [#allocation14], 1
    %s1207 = scalar_lea.sflag [#allocation14], 1
    %1208 = vsyncpa %s1207, 1
    %1209 = vsyncpa [#allocation6], 1
    %s1210 = scalar_lea.sflag [#allocation6], 1
    %1211 = vsyncpa %s1210, 1

</llo_original>
